<compile_context>
chip_gen: v7x
topology: tpu7x:2x2x1
jax: 0.10.0
libtpu: 0.0.40
codegen_flags: <defaults>
</compile_context>

<pallas_src>
import functools

import jax
import jax.numpy as jnp
from jax import lax
from jax.experimental import pallas as pl
from jax.experimental.pallas import tpu as pltpu

# Working sets here are < 4 MiB; 32 MiB is safely above that on every
# generation (raise on v6e only if deeper Buffered pipelining is added).
_VMEM_LIMIT = 32 * 1024 * 1024


def _round_up(v, m):
    return ((v + m - 1) // m) * m


# ---------------------------------------------------------------------------
# Feature projection  Y = X @ W   (tiny matmul, grid over node-row tiles)
# ---------------------------------------------------------------------------
def _project_kernel(x_ref, w_ref, y_ref):
    y_ref[...] = jnp.dot(x_ref[...], w_ref[...],
                         preferred_element_type=jnp.float32).astype(y_ref.dtype)


def project(x_bf16, w_bf16, *, tm=512):
    n, f = x_bf16.shape
    h = w_bf16.shape[1]
    tm = min(tm, n)
    assert n % tm == 0, "node count must divide the row tile size"
    return pl.pallas_call(
        _project_kernel,
        out_shape=jax.ShapeDtypeStruct((n, h), jnp.bfloat16),
        grid_spec=pltpu.PrefetchScalarGridSpec(
            num_scalar_prefetch=0,
            grid=(n // tm,),
            in_specs=[pl.BlockSpec((tm, f), lambda i: (i, 0)),
                      pl.BlockSpec((f, h), lambda i: (0, 0))],
            out_specs=pl.BlockSpec((tm, h), lambda i: (i, 0))),
        compiler_params=pltpu.CompilerParams(
            dimension_semantics=("parallel",),
            vmem_limit_bytes=_VMEM_LIMIT),
    )(x_bf16, w_bf16)


# ---------------------------------------------------------------------------
# GCN aggregation  out = act(Â @ Y + b)
# grid = (node-row tiles, K tiles over Â columns); accumulator pattern (P3).
# ---------------------------------------------------------------------------
def _gcn_agg_kernel(a_ref, y_ref, b_ref, out_ref, acc_ref, *, apply_relu):
    k = pl.program_id(1)

    @pl.when(k == 0)
    def _():
        acc_ref[...] = jnp.zeros_like(acc_ref)

    # acc += Â[rows, kcols] @ Y[kcols, :]   (bf16 operands, f32 accumulation)
    acc_ref[...] += jnp.dot(a_ref[...], y_ref[...],
                            preferred_element_type=jnp.float32)

    @pl.when(k == pl.num_programs(1) - 1)
    def _():
        h = acc_ref[...] + b_ref[...]
        if apply_relu:
            h = jnp.maximum(h, 0.0)
        out_ref[...] = h.astype(out_ref.dtype)


def gcn_aggregate(a_bf16, y_bf16, b_f32, *, apply_relu, out_dtype, tm=512, tk=512):
    n = a_bf16.shape[0]
    h = y_bf16.shape[1]
    tm = min(tm, n)
    tk = min(tk, n)
    assert n % tm == 0 and n % tk == 0, "node count must divide the tile sizes"
    return pl.pallas_call(
        functools.partial(_gcn_agg_kernel, apply_relu=apply_relu),
        out_shape=jax.ShapeDtypeStruct((n, h), out_dtype),
        grid_spec=pltpu.PrefetchScalarGridSpec(
            num_scalar_prefetch=0,
            grid=(n // tm, n // tk),
            in_specs=[
                pl.BlockSpec((tm, tk), lambda i, k: (i, k)),   # Â tile
                pl.BlockSpec((tk, h), lambda i, k: (k, 0)),    # Y k-rows
                pl.BlockSpec((1, h), lambda i, k: (0, 0)),     # bias (resident)
            ],
            out_specs=pl.BlockSpec((tm, h), lambda i, k: (i, 0)),
            scratch_shapes=[pltpu.VMEM((tm, h), jnp.float32)]),
        compiler_params=pltpu.CompilerParams(
            dimension_semantics=("parallel", "arbitrary"),
            vmem_limit_bytes=_VMEM_LIMIT),
    )(a_bf16, y_bf16, b_f32)


# ---------------------------------------------------------------------------
# Phase 2: per-edge classifier, grid over edge tiles.
# src/dst live in SMEM (flat 1-D scalar prefetch); h2 is VMEM-resident, f32 and
# 128-lane dense, so each gathered row is one full vreg; both rows land in a
# single combined (te, 256) scratch that feeds ONE fused K=256 matmul.
# ---------------------------------------------------------------------------
def _edge_classifier_kernel(src_ref, dst_ref,                  # SMEM (E,) int32
                            h2_ref, eattr_ref,
                            wsd_ref, we_ref, bc1_ref, wc2_ref, bc2_ref,
                            out_ref,
                            comb_ref):
    te = out_ref.shape[0]
    hp = h2_ref.shape[1]                       # 128 (lane-padded hidden)
    e0 = pl.program_id(0) * te

    # TODO(synk): indices are assumed in [0, N); clamp/debug_check them if
    # edge_index ever comes from untrusted input (VMEM has no bounds check).
    def gather(i, carry):
        s = src_ref[e0 + i]
        d = dst_ref[e0 + i]
        comb_ref[pl.ds(i, 1), pl.ds(0, hp)] = h2_ref[pl.ds(s, 1), :]
        comb_ref[pl.ds(i, 1), pl.ds(hp, hp)] = h2_ref[pl.ds(d, 1), :]
        return carry

    lax.fori_loop(0, te, gather, 0, unroll=(8 if te % 8 == 0 else 1))

    f32 = jnp.float32
    bf16 = jnp.bfloat16
    comb = comb_ref[...].astype(bf16)          # one bulk cast, (te, 2*hp)
    # concat([xs, xd]) @ [Wc1_src ; Wc1_dst]  fused into a single K=256 matmul;
    # edge_attr keeps its own tiny K=F_edge matmul (no gather needed for it).
    z = (jnp.dot(comb, wsd_ref[...], preferred_element_type=f32)
         + jnp.dot(eattr_ref[...], we_ref[...], preferred_element_type=f32)
         + bc1_ref[...])
    z = jnp.maximum(z, 0.0)
    out_ref[...] = (jnp.dot(z.astype(bf16), wc2_ref[...],
                            preferred_element_type=f32)
                    + bc2_ref[...]).astype(out_ref.dtype)


def gcn_normalized_adjacency(edge_index, num_nodes):
    """Dense D^-1/2 (A + I) D^-1/2 with PyG GCNConv (source_to_target) semantics."""
    # TODO(synk): PyG uses add_remaining_self_loops; if the input graph already
    # contains self-loops this unconditional +I differs from torch_geometric.
    src, dst = edge_index[0], edge_index[1]
    m = jnp.zeros((num_nodes, num_nodes), jnp.float32)
    m = m.at[dst, src].add(1.0)                           # messages src -> dst
    m = m + jnp.eye(num_nodes, dtype=jnp.float32)
    deg = jnp.sum(m, axis=1)
    dinv = jnp.where(deg > 0, 1.0 / jnp.sqrt(deg), 0.0)
    return dinv[:, None] * m * dinv[None, :]


def edge_classifier_forward(x, edge_index, edge_attr, params,
                            *, tm=512, tk=512, te=256):
    n = x.shape[0]
    e = edge_index.shape[1]
    h = params["w1"].shape[1]                  # GCN hidden (32)
    f_edge = edge_attr.shape[1]
    hid = params["wc1"].shape[1]               # classifier hidden (64)
    c = params["wc2"].shape[1]                 # num classes

    bf16 = jnp.bfloat16
    f32 = jnp.float32

    h_pad = _round_up(h, 128)                  # lane-dense GCN hidden
    hid_p = _round_up(hid, 128)
    c_p = _round_up(c, 128)

    # ---- plain-JAX glue: dense normalized adjacency (scatter-add) ----------
    a = gcn_normalized_adjacency(edge_index, n).astype(bf16)

    # ---- lane-pad GCN weights / biases to 128 output lanes ------------------
    w1p = jnp.zeros((x.shape[1], h_pad), f32).at[:, :h].set(params["w1"]).astype(bf16)
    b1p = jnp.zeros((1, h_pad), f32).at[:, :h].set(params["b1"])
    w2p = jnp.zeros((h_pad, h_pad), f32).at[:h, :h].set(params["w2"]).astype(bf16)
    b2p = jnp.zeros((1, h_pad), f32).at[:, :h].set(params["b2"])

    # ---- phase 1: two GCN layers (project then aggregate) -------------------
    y1 = project(x.astype(bf16), w1p, tm=tm)                              # (N,128) bf16
    h1 = gcn_aggregate(a, y1, b1p, apply_relu=True, out_dtype=bf16,
                       tm=tm, tk=tk)                                      # (N,128) bf16
    y2 = project(h1, w2p, tm=tm)                                          # (N,128) bf16
    # h2 stays f32 + 128-lane dense: each gathered row in phase 2 is exactly
    # one full vreg (dynamic single-row access of packed bf16 is messier).
    h2 = gcn_aggregate(a, y2, b2p, apply_relu=False, out_dtype=f32,
                       tm=tm, tk=tk)                                      # (N,128) f32

    # ---- fused classifier weights (lane/row padded, bf16) --------------------
    wc1 = params["wc1"]                        # (2H + F_edge, hid)
    wsd = (jnp.zeros((2 * h_pad, hid_p), f32)
           .at[:h, :hid].set(wc1[:h])
           .at[h_pad:h_pad + h, :hid].set(wc1[h:2 * h])
           .astype(bf16))                      # [Wc1_src ; Wc1_dst] stacked, K=256
    we = jnp.zeros((f_edge, hid_p), f32).at[:, :hid].set(wc1[2 * h:]).astype(bf16)
    bc1p = jnp.zeros((1, hid_p), f32).at[:, :hid].set(params["bc1"])
    wc2p = jnp.zeros((hid_p, c_p), f32).at[:hid, :c].set(params["wc2"]).astype(bf16)
    bc2p = jnp.zeros((1, c_p), f32).at[:, :c].set(params["bc2"])

    te = min(te, e)
    assert e % te == 0, "edge count must divide the edge tile size"

    src = edge_index[0].astype(jnp.int32)      # flat 1-D SMEM prefetch arrays
    dst = edge_index[1].astype(jnp.int32)

    out_padded = pl.pallas_call(
        _edge_classifier_kernel,
        out_shape=jax.ShapeDtypeStruct((e, c_p), f32),
        grid_spec=pltpu.PrefetchScalarGridSpec(
            num_scalar_prefetch=2,                         # src, dst -> SMEM
            grid=(e // te,),
            in_specs=[
                pl.BlockSpec((n, h_pad), lambda i, s, d: (0, 0)),        # h2 (resident)
                pl.BlockSpec((te, f_edge), lambda i, s, d: (i, 0)),      # edge_attr tile
                pl.BlockSpec((2 * h_pad, hid_p), lambda i, s, d: (0, 0)),# fused Wc1 src|dst
                pl.BlockSpec((f_edge, hid_p), lambda i, s, d: (0, 0)),   # Wc1 edge part
                pl.BlockSpec((1, hid_p), lambda i, s, d: (0, 0)),        # bc1
                pl.BlockSpec((hid_p, c_p), lambda i, s, d: (0, 0)),      # Wc2
                pl.BlockSpec((1, c_p), lambda i, s, d: (0, 0)),          # bc2
            ],
            out_specs=pl.BlockSpec((te, c_p), lambda i, s, d: (i, 0)),
            scratch_shapes=[pltpu.VMEM((te, 2 * h_pad), jnp.float32)]),
        compiler_params=pltpu.CompilerParams(
            dimension_semantics=("parallel",),
            vmem_limit_bytes=_VMEM_LIMIT),
    )(src, dst, h2, edge_attr.astype(bf16), wsd, we, bc1p, wc2p, bc2p)

    return out_padded[:, :c]


def reference_forward(x, edge_index, edge_attr, params):
    a = gcn_normalized_adjacency(edge_index, x.shape[0])
    h1 = jnp.maximum(a @ (x @ params["w1"]) + params["b1"], 0.0)
    h2 = a @ (h1 @ params["w2"]) + params["b2"]
    ef = jnp.concatenate([h2[edge_index[0]], h2[edge_index[1]], edge_attr], axis=1)
    z = jnp.maximum(ef @ params["wc1"] + params["bc1"], 0.0)
    return z @ params["wc2"] + params["bc2"]


if __name__ == "__main__":
    # Small shapes, but large enough that the node/edge grids actually tile.
    N = 256                # nodes
    E = 512                # edges
    F_NODE = 8             # in_channels_node
    F_EDGE = 4             # in_channels_edge
    H = 32                 # hidden_channels
    C = 4                  # num_classes

    key = jax.random.PRNGKey(0)
    keys = jax.random.split(key, 10)

    x = jax.random.normal(keys[0], (N, F_NODE), jnp.float32)
    src = jax.random.randint(keys[1], (E,), 0, N, jnp.int32)
    dst = jax.random.randint(keys[2], (E,), 0, N, jnp.int32)
    edge_index = jnp.stack([src, dst], axis=0)
    edge_attr = jax.random.normal(keys[3], (E, F_EDGE), jnp.float32)

    params = {
        "w1": 0.1 * jax.random.normal(keys[4], (F_NODE, H), jnp.float32),
        "b1": jnp.zeros((1, H), jnp.float32),
        "w2": 0.1 * jax.random.normal(keys[5], (H, H), jnp.float32),
        "b2": jnp.zeros((1, H), jnp.float32),
        "wc1": 0.1 * jax.random.normal(keys[6], (2 * H + F_EDGE, 64), jnp.float32),
        "bc1": 0.01 * jnp.ones((1, 64), jnp.float32),
        "wc2": 0.1 * jax.random.normal(keys[7], (64, C), jnp.float32),
        "bc2": jnp.zeros((1, C), jnp.float32),
    }

    out = edge_classifier_forward(x, edge_index, edge_attr, params)
    out = jax.block_until_ready(out)

    ref = reference_forward(x, edge_index, edge_attr, params)
    assert out.shape == (E, C)
    # bf16 matmul operands (f32 accumulation) => loosened tolerance vs f32 ref.
    assert jnp.allclose(out, ref, atol=3e-2, rtol=3e-2), "mismatch vs JAX reference"

    print("KERNEL_OK")
</pallas_src>

<mosaic_0001>
module attributes {stable_mosaic.version = 11 : i64} {
  func.func @_project_kernel(%arg0: i32, %arg1: memref<256x8xbf16, #tpu.memory_space<vmem>>, %arg2: memref<8x128xbf16, #tpu.memory_space<vmem>>, %arg3: memref<256x128xbf16, #tpu.memory_space<vmem>>) attributes {dimension_semantics = [#tpu.dimension_semantics<parallel>], iteration_bounds = array<i64: 1>, scalar_prefetch = 0 : i64, scratch_operands = 0 : i64, tpu.core_type = #tpu.core_type<tc>, window_params = [{transform_indices = @transform_0, window_bounds = array<i64: 256, 8>}, {pipeline_mode = #tpu.pipeline_mode<synchronous>, transform_indices = @transform_1, window_bounds = array<i64: 8, 128>}, {transform_indices = @transform_2, window_bounds = array<i64: 256, 128>}]} {
    %c0 = arith.constant 0 : index
    %c0_0 = arith.constant 0 : index
    %0 = vector.load %arg1[%c0, %c0_0] : memref<256x8xbf16, #tpu.memory_space<vmem>>, vector<256x8xbf16>
    %c0_1 = arith.constant 0 : index
    %c0_2 = arith.constant 0 : index
    %1 = vector.load %arg2[%c0_1, %c0_2] : memref<8x128xbf16, #tpu.memory_space<vmem>>, vector<8x128xbf16>
    %cst = arith.constant dense<0.000000e+00> : vector<256x128xf32>
    %2 = tpu.matmul %0, %1, %cst {dimension_numbers = #tpu.dot_dimension_numbers<[1], [0], [0], [1], [0, 0, 1, 1], [], []>} : vector<256x8xbf16>, vector<8x128xbf16>, vector<256x128xf32> -> vector<256x128xf32>
    %3 = arith.truncf %2 : vector<256x128xf32> to vector<256x128xbf16>
    %c0_3 = arith.constant 0 : index
    %c0_4 = arith.constant 0 : index
    %4 = vector.load %arg3[%c0_3, %c0_4] : memref<256x128xbf16, #tpu.memory_space<vmem>>, vector<256x128xbf16>
    tpu.vector_store %arg3[%c0_3, %c0_4], %3 {strides = array<i32>} : memref<256x128xbf16, #tpu.memory_space<vmem>>, vector<256x128xbf16>,
    return
  }
  func.func @transform_0(%arg0: i32) -> (i32, i32) {
    %c0_i32 = arith.constant 0 : i32
    %c0_i32_0 = arith.constant 0 : i32
    return %arg0, %c0_i32 : i32, i32
  }
  func.func @transform_1(%arg0: i32) -> (i32, i32) {
    %c0_i32 = arith.constant 0 : i32
    %c0_i32_0 = arith.constant 0 : i32
    %c0_i32_1 = arith.constant 0 : i32
    return %c0_i32, %c0_i32_0 : i32, i32
  }
  func.func @transform_2(%arg0: i32) -> (i32, i32) {
    %c0_i32 = arith.constant 0 : i32
    %c0_i32_0 = arith.constant 0 : i32
    return %arg0, %c0_i32 : i32, i32
  }
}

</mosaic_0001>

<llo_original>
// kernel: tpu_custom_call.1
$region0: #{tpu_custom_call.1}
  #allocation0 [shape = 'u32[]', space=smem, size = 0x4, offset = 0x4, fixed_abs, tag = 'smem constant byte address 0x4 - core index']
  #allocation1 [shape = 'u32[144,128]{1,0:T(1,128)}', space=vmem, size = 0x12000, scoped, tag = 'internal scratch']
  %s0 = inlined_call_operand.vmem [shape: bf16[256,8], index: 0, kind: input, shape index: {}]
  %s1 = inlined_call_operand.vmem [shape: bf16[8,128], index: 1, kind: input, shape index: {}]
  %s2 = inlined_call_operand.hbm [shape: bf16[256,128], index: 2, kind: output, shape index: {}]
  %s3 = sld [smem:[#allocation0]]
  $region18: #{tpu_custom_call.1} parent=0
    _
  %s5 = ssub.s32 1, %s3
  %s6 = scalar_select 0, %s5, %s3
  $region1: #{tpu_custom_call.1} parent=0
    #allocation2 [shape = 'u8[65536]{0}', space=vmem, size = 0x10000, scoped, tag = 'output window, operand 0, single buffered']
    #allocation3 [shape = 's32[1]{0}', space=sflag, size = 0x4, scoped, tag = 'scoped memory for tpu_custom_call.1']
    %7 = vsyncpa [#allocation3], 0
    // Predicated region
    $region2: #{tpu_custom_call.1} parent=1 // pred_check
      _
    $region3: #{tpu_custom_call.1} parent=1 // pred_check_branch
      %9 = sbr.rel (0) target = $region5
    $region4: #{tpu_custom_call.1} parent=1 // pred_region
      _
    $region5: #{tpu_custom_call.1} parent=1 // pred_fallthru
      _
    // Predicated region
    $region6: #{tpu_custom_call.1} parent=1 // pred_check
      _
    $region7: #{tpu_custom_call.1} parent=1 // pred_check_branch
      %11 = sbr.rel (0) target = $region9
    $region8: #{tpu_custom_call.1} parent=1 // pred_region
      _
    $region9: #{tpu_custom_call.1} parent=1 // pred_fallthru
      _
    %v13 = vld [vmem:[%s0] sm:$0xf]
    %v14 = vld [vmem:[%s0 + $0x4] sm:$0xf]
    %v15 = vld [vmem:[%s0 + $0x8] sm:$0xf]
    %v16 = vld [vmem:[%s0 + $0xc] sm:$0xf]
    %v17 = vld [vmem:[%s0 + $0x10] sm:$0xf]
    %v18 = vld [vmem:[%s0 + $0x14] sm:$0xf]
    %v19 = vld [vmem:[%s0 + $0x18] sm:$0xf]
    %v20 = vld [vmem:[%s0 + $0x1c] sm:$0xf]
    %v21 = vld [vmem:[%s0 + $0x20] sm:$0xf]
    %v22 = vld [vmem:[%s0 + $0x24] sm:$0xf]
    %v23 = vld [vmem:[%s0 + $0x28] sm:$0xf]
    %v24 = vld [vmem:[%s0 + $0x2c] sm:$0xf]
    %v25 = vld [vmem:[%s0 + $0x30] sm:$0xf]
    %v26 = vld [vmem:[%s0 + $0x34] sm:$0xf]
    %v27 = vld [vmem:[%s0 + $0x38] sm:$0xf]
    %v28 = vld [vmem:[%s0 + $0x3c] sm:$0xf]
    %v29 = vld [vmem:[%s0 + $0x40] sm:$0xf]
    %v30 = vld [vmem:[%s0 + $0x44] sm:$0xf]
    %v31 = vld [vmem:[%s0 + $0x48] sm:$0xf]
    %v32 = vld [vmem:[%s0 + $0x4c] sm:$0xf]
    %v33 = vld [vmem:[%s0 + $0x50] sm:$0xf]
    %v34 = vld [vmem:[%s0 + $0x54] sm:$0xf]
    %v35 = vld [vmem:[%s0 + $0x58] sm:$0xf]
    %v36 = vld [vmem:[%s0 + $0x5c] sm:$0xf]
    %v37 = vld [vmem:[%s0 + $0x60] sm:$0xf]
    %v38 = vld [vmem:[%s0 + $0x64] sm:$0xf]
    %v39 = vld [vmem:[%s0 + $0x68] sm:$0xf]
    %v40 = vld [vmem:[%s0 + $0x6c] sm:$0xf]
    %v41 = vld [vmem:[%s0 + $0x70] sm:$0xf]
    %v42 = vld [vmem:[%s0 + $0x74] sm:$0xf]
    %v43 = vld [vmem:[%s0 + $0x78] sm:$0xf]
    %v44 = vld [vmem:[%s0 + $0x7c] sm:$0xf]
    %v45 = vld [vmem:[%s1] sm:$0xf]
    %v78 = vunpack.c.l.b16 %v13
    %v79 = vunpack.c.l.b16 %v14
    %v80 = vunpack.c.l.b16 %v15
    %v81 = vunpack.c.l.b16 %v16
    %v82 = vunpack.c.l.b16 %v17
    %v83 = vunpack.c.l.b16 %v18
    %v84 = vunpack.c.l.b16 %v19
    %v85 = vunpack.c.l.b16 %v20
    %v86 = vunpack.c.l.b16 %v21
    %v87 = vunpack.c.l.b16 %v22
    %v88 = vunpack.c.l.b16 %v23
    %v89 = vunpack.c.l.b16 %v24
    %v90 = vunpack.c.l.b16 %v25
    %v91 = vunpack.c.l.b16 %v26
    %v92 = vunpack.c.l.b16 %v27
    %v93 = vunpack.c.l.b16 %v28
    %v94 = vunpack.c.l.b16 %v29
    %v95 = vunpack.c.l.b16 %v30
    %v96 = vunpack.c.l.b16 %v31
    %v97 = vunpack.c.l.b16 %v32
    %v98 = vunpack.c.l.b16 %v33
    %v99 = vunpack.c.l.b16 %v34
    %v100 = vunpack.c.l.b16 %v35
    %v101 = vunpack.c.l.b16 %v36
    %v102 = vunpack.c.l.b16 %v37
    %v103 = vunpack.c.l.b16 %v38
    %v104 = vunpack.c.l.b16 %v39
    %v105 = vunpack.c.l.b16 %v40
    %v106 = vunpack.c.l.b16 %v41
    %v107 = vunpack.c.l.b16 %v42
    %v108 = vunpack.c.l.b16 %v43
    %v109 = vunpack.c.l.b16 %v44
    %v110 = vpack.c.b16 %v79, %v78
    %v111 = vpack.c.b16 %v81, %v80
    %v112 = vpack.c.b16 %v83, %v82
    %v113 = vpack.c.b16 %v85, %v84
    %v114 = vpack.c.b16 %v87, %v86
    %v115 = vpack.c.b16 %v89, %v88
    %v116 = vpack.c.b16 %v91, %v90
    %v117 = vpack.c.b16 %v93, %v92
    %v118 = vpack.c.b16 %v95, %v94
    %v119 = vpack.c.b16 %v97, %v96
    %v120 = vpack.c.b16 %v99, %v98
    %v121 = vpack.c.b16 %v101, %v100
    %v122 = vpack.c.b16 %v103, %v102
    %v123 = vpack.c.b16 %v105, %v104
    %v124 = vpack.c.b16 %v107, %v106
    %v125 = vpack.c.b16 %v109, %v108
    %vm126 = vcmask 64512
    %v128 = vsel %vm126, %v110, 0
    %v131 = vsel %vm126, %v111, 0
    %v134 = vsel %vm126, %v112, 0
    %v137 = vsel %vm126, %v113, 0
    %v140 = vsel %vm126, %v114, 0
    %v143 = vsel %vm126, %v115, 0
    %v146 = vsel %vm126, %v116, 0
    %v149 = vsel %vm126, %v117, 0
    %v152 = vsel %vm126, %v118, 0
    %v155 = vsel %vm126, %v119, 0
    %v158 = vsel %vm126, %v120, 0
    %v161 = vsel %vm126, %v121, 0
    %v164 = vsel %vm126, %v122, 0
    %v167 = vsel %vm126, %v123, 0
    %v170 = vsel %vm126, %v124, 0
    %v173 = vsel %vm126, %v125, 0
    %vm175 = vcmask 1043456
    %v177 = vsel %vm175, %v45, 0
    %179 = vmatprep.subr.bf16.mxu0 0
    %180 = vmatpush1.bf16.msra.mxu0 %v177
    %181 = vmatprep.subr.bf16.mxu0 0
    %182 = vmatpush1.bf16.msra.mxu0 0
    %183 = vmatprep.subr.bf16.mxu0 0
    %184 = vmatpush1.bf16.msra.mxu0 0
    %185 = vmatprep.subr.bf16.mxu0 0
    %186 = vmatpush1.bf16.msra.mxu0 0
    %187 = vmatprep.subr.bf16.mxu0 0
    %188 = vmatpush1.bf16.msra.mxu0 0
    %189 = vmatprep.subr.bf16.mxu0 0
    %190 = vmatpush1.bf16.msra.mxu0 0
    %191 = vmatprep.subr.bf16.mxu0 0
    %192 = vmatpush1.bf16.msra.mxu0 0
    %193 = vmatprep.subr.bf16.mxu0 0
    %194 = vmatpush1.bf16.msra.mxu0 0
    %195 = vmatprep.subr.bf16.mxu0 0
    %196 = vmatpush1.bf16.msra.mxu0 0
    %197 = vmatprep.subr.bf16.mxu0 0
    %198 = vmatpush1.bf16.msra.mxu0 0
    %199 = vmatprep.subr.bf16.mxu0 0
    %200 = vmatpush1.bf16.msra.mxu0 0
    %201 = vmatprep.subr.bf16.mxu0 0
    %202 = vmatpush1.bf16.msra.mxu0 0
    %203 = vmatprep.subr.bf16.mxu0 0
    %204 = vmatpush1.bf16.msra.mxu0 0
    %205 = vmatprep.subr.bf16.mxu0 0
    %206 = vmatpush1.bf16.msra.mxu0 0
    %207 = vmatprep.subr.bf16.mxu0 0
    %208 = vmatpush1.bf16.msra.mxu0 0
    %209 = vmatprep.subr.bf16.mxu0 0
    %210 = vmatpush1.bf16.msra.mxu0 0
    %211 = vmatprep.mubr.bf16.mxu0 0
    %212 = vmatmul.mubr.bf16.gmra.mrb[0].mxu0 %v128
    %v213 = vpop.f32.mrb[0].mxu0
    %v214 = vadd.f32 0.0, %v213
    %v215 = vpop.f32.mrb[0].mxu0
    %v216 = vpop.f32.mrb[0].mxu0
    %v217 = vadd.f32 0.0, %v216
    %v218 = vpop.f32.mrb[0].mxu0
    %219 = vmatprep.mubr.bf16.mxu0 0
    %220 = vmatmul.mubr.bf16.gmra.mrb[0].mxu0 %v131
    %v221 = vpop.f32.mrb[0].mxu0
    %v222 = vadd.f32 0.0, %v221
    %v223 = vpop.f32.mrb[0].mxu0
    %v224 = vpop.f32.mrb[0].mxu0
    %v225 = vadd.f32 0.0, %v224
    %v226 = vpop.f32.mrb[0].mxu0
    %227 = vmatprep.mubr.bf16.mxu0 0
    %228 = vmatmul.mubr.bf16.gmra.mrb[0].mxu0 %v134
    %v229 = vpop.f32.mrb[0].mxu0
    %v230 = vadd.f32 0.0, %v229
    %v231 = vpop.f32.mrb[0].mxu0
    %v232 = vpop.f32.mrb[0].mxu0
    %v233 = vadd.f32 0.0, %v232
    %v234 = vpop.f32.mrb[0].mxu0
    %235 = vmatprep.mubr.bf16.mxu0 0
    %236 = vmatmul.mubr.bf16.gmra.mrb[0].mxu0 %v137
    %v237 = vpop.f32.mrb[0].mxu0
    %v238 = vadd.f32 0.0, %v237
    %v239 = vpop.f32.mrb[0].mxu0
    %v240 = vpop.f32.mrb[0].mxu0
    %v241 = vadd.f32 0.0, %v240
    %v242 = vpop.f32.mrb[0].mxu0
    %243 = vmatprep.mubr.bf16.mxu0 0
    %244 = vmatmul.mubr.bf16.gmra.mrb[0].mxu0 %v140
    %v245 = vpop.f32.mrb[0].mxu0
    %v246 = vadd.f32 0.0, %v245
    %v247 = vpop.f32.mrb[0].mxu0
    %v248 = vpop.f32.mrb[0].mxu0
    %v249 = vadd.f32 0.0, %v248
    %v250 = vpop.f32.mrb[0].mxu0
    %251 = vmatprep.mubr.bf16.mxu0 0
    %252 = vmatmul.mubr.bf16.gmra.mrb[0].mxu0 %v143
    %v253 = vpop.f32.mrb[0].mxu0
    %v254 = vadd.f32 0.0, %v253
    %v255 = vpop.f32.mrb[0].mxu0
    %v256 = vpop.f32.mrb[0].mxu0
    %v257 = vadd.f32 0.0, %v256
    %v258 = vpop.f32.mrb[0].mxu0
    %259 = vmatprep.mubr.bf16.mxu0 0
    %260 = vmatmul.mubr.bf16.gmra.mrb[0].mxu0 %v146
    %v261 = vpop.f32.mrb[0].mxu0
    %v262 = vadd.f32 0.0, %v261
    %v263 = vpop.f32.mrb[0].mxu0
    %v264 = vpop.f32.mrb[0].mxu0
    %v265 = vadd.f32 0.0, %v264
    %v266 = vpop.f32.mrb[0].mxu0
    %267 = vmatprep.mubr.bf16.mxu0 0
    %268 = vmatmul.mubr.bf16.gmra.mrb[0].mxu0 %v149
    %v269 = vpop.f32.mrb[0].mxu0
    %v270 = vadd.f32 0.0, %v269
    %v271 = vpop.f32.mrb[0].mxu0
    %v272 = vpop.f32.mrb[0].mxu0
    %v273 = vadd.f32 0.0, %v272
    %v274 = vpop.f32.mrb[0].mxu0
    %275 = vmatprep.mubr.bf16.mxu0 0
    %276 = vmatmul.mubr.bf16.gmra.mrb[0].mxu0 %v152
    %v277 = vpop.f32.mrb[0].mxu0
    %v278 = vadd.f32 0.0, %v277
    %v279 = vpop.f32.mrb[0].mxu0
    %v280 = vpop.f32.mrb[0].mxu0
    %v281 = vadd.f32 0.0, %v280
    %v282 = vpop.f32.mrb[0].mxu0
    %283 = vmatprep.mubr.bf16.mxu0 0
    %284 = vmatmul.mubr.bf16.gmra.mrb[0].mxu0 %v155
    %v285 = vpop.f32.mrb[0].mxu0
    %v286 = vadd.f32 0.0, %v285
    %v287 = vpop.f32.mrb[0].mxu0
    %v288 = vpop.f32.mrb[0].mxu0
    %v289 = vadd.f32 0.0, %v288
    %v290 = vpop.f32.mrb[0].mxu0
    %291 = vmatprep.mubr.bf16.mxu0 0
    %292 = vmatmul.mubr.bf16.gmra.mrb[0].mxu0 %v158
    %v293 = vpop.f32.mrb[0].mxu0
    %v294 = vadd.f32 0.0, %v293
    %v295 = vpop.f32.mrb[0].mxu0
    %v296 = vpop.f32.mrb[0].mxu0
    %v297 = vadd.f32 0.0, %v296
    %v298 = vpop.f32.mrb[0].mxu0
    %299 = vmatprep.mubr.bf16.mxu0 0
    %300 = vmatmul.mubr.bf16.gmra.mrb[0].mxu0 %v161
    %v301 = vpop.f32.mrb[0].mxu0
    %v302 = vadd.f32 0.0, %v301
    %v303 = vpop.f32.mrb[0].mxu0
    %v304 = vpop.f32.mrb[0].mxu0
    %v305 = vadd.f32 0.0, %v304
    %v306 = vpop.f32.mrb[0].mxu0
    %307 = vmatprep.mubr.bf16.mxu0 0
    %308 = vmatmul.mubr.bf16.gmra.mrb[0].mxu0 %v164
    %v309 = vpop.f32.mrb[0].mxu0
    %v310 = vadd.f32 0.0, %v309
    %v311 = vpop.f32.mrb[0].mxu0
    %v312 = vpop.f32.mrb[0].mxu0
    %v313 = vadd.f32 0.0, %v312
    %v314 = vpop.f32.mrb[0].mxu0
    %315 = vmatprep.mubr.bf16.mxu0 0
    %316 = vmatmul.mubr.bf16.gmra.mrb[0].mxu0 %v167
    %v317 = vpop.f32.mrb[0].mxu0
    %v318 = vadd.f32 0.0, %v317
    %v319 = vpop.f32.mrb[0].mxu0
    %v320 = vpop.f32.mrb[0].mxu0
    %v321 = vadd.f32 0.0, %v320
    %v322 = vpop.f32.mrb[0].mxu0
    %323 = vmatprep.mubr.bf16.mxu0 0
    %324 = vmatmul.mubr.bf16.gmra.mrb[0].mxu0 %v170
    %v325 = vpop.f32.mrb[0].mxu0
    %v326 = vadd.f32 0.0, %v325
    %v327 = vpop.f32.mrb[0].mxu0
    %v328 = vpop.f32.mrb[0].mxu0
    %v329 = vadd.f32 0.0, %v328
    %v330 = vpop.f32.mrb[0].mxu0
    %331 = vmatprep.mubr.bf16.mxu0 0
    %332 = vmatmul.mubr.bf16.gmra.mrb[0].mxu0 %v173
    %v333 = vpop.f32.mrb[0].mxu0
    %v334 = vadd.f32 0.0, %v333
    %v335 = vpop.f32.mrb[0].mxu0
    %v336 = vpop.f32.mrb[0].mxu0
    %v337 = vadd.f32 0.0, %v336
    %v338 = vpop.f32.mrb[0].mxu0
    %339 = vdwg.mxu0
    %v340 = vpack.c.bf16 %v217, %v214
    %v341 = vpack.c.bf16 %v225, %v222
    %v342 = vpack.c.bf16 %v233, %v230
    %v343 = vpack.c.bf16 %v241, %v238
    %v344 = vpack.c.bf16 %v249, %v246
    %v345 = vpack.c.bf16 %v257, %v254
    %v346 = vpack.c.bf16 %v265, %v262
    %v347 = vpack.c.bf16 %v273, %v270
    %v348 = vpack.c.bf16 %v281, %v278
    %v349 = vpack.c.bf16 %v289, %v286
    %v350 = vpack.c.bf16 %v297, %v294
    %v351 = vpack.c.bf16 %v305, %v302
    %v352 = vpack.c.bf16 %v313, %v310
    %v353 = vpack.c.bf16 %v321, %v318
    %v354 = vpack.c.bf16 %v329, %v326
    %v355 = vpack.c.bf16 %v337, %v334
    %v372 = vunpack.c.l.b16 %v340
    %v373 = vunpack.c.h.b16 %v340
    %v374 = vunpack.c.l.b16 %v341
    %v375 = vunpack.c.h.b16 %v341
    %v376 = vunpack.c.l.b16 %v342
    %v377 = vunpack.c.h.b16 %v342
    %v378 = vunpack.c.l.b16 %v343
    %v379 = vunpack.c.h.b16 %v343
    %v380 = vunpack.c.l.b16 %v344
    %v381 = vunpack.c.h.b16 %v344
    %v382 = vunpack.c.l.b16 %v345
    %v383 = vunpack.c.h.b16 %v345
    %v384 = vunpack.c.l.b16 %v346
    %v385 = vunpack.c.h.b16 %v346
    %v386 = vunpack.c.l.b16 %v347
    %v387 = vunpack.c.h.b16 %v347
    %v388 = vunpack.c.l.b16 %v348
    %v389 = vunpack.c.h.b16 %v348
    %v390 = vunpack.c.l.b16 %v349
    %v391 = vunpack.c.h.b16 %v349
    %v392 = vunpack.c.l.b16 %v350
    %v393 = vunpack.c.h.b16 %v350
    %v394 = vunpack.c.l.b16 %v351
    %v395 = vunpack.c.h.b16 %v351
    %v396 = vunpack.c.l.b16 %v352
    %v397 = vunpack.c.h.b16 %v352
    %v398 = vunpack.c.l.b16 %v353
    %v399 = vunpack.c.h.b16 %v353
    %v400 = vunpack.c.l.b16 %v354
    %v401 = vunpack.c.h.b16 %v354
    %v402 = vunpack.c.l.b16 %v355
    %v403 = vunpack.c.h.b16 %v355
    %v404 = vpack.c.b16 %v372, %v372
    %v405 = vpack.c.b16 %v373, %v373
    %v406 = vpack.c.b16 %v374, %v374
    %v407 = vpack.c.b16 %v375, %v375
    %v408 = vpack.c.b16 %v376, %v376
    %v409 = vpack.c.b16 %v377, %v377
    %v410 = vpack.c.b16 %v378, %v378
    %v411 = vpack.c.b16 %v379, %v379
    %v412 = vpack.c.b16 %v380, %v380
    %v413 = vpack.c.b16 %v381, %v381
    %v414 = vpack.c.b16 %v382, %v382
    %v415 = vpack.c.b16 %v383, %v383
    %v416 = vpack.c.b16 %v384, %v384
    %v417 = vpack.c.b16 %v385, %v385
    %v418 = vpack.c.b16 %v386, %v386
    %v419 = vpack.c.b16 %v387, %v387
    %v420 = vpack.c.b16 %v388, %v388
    %v421 = vpack.c.b16 %v389, %v389
    %v422 = vpack.c.b16 %v390, %v390
    %v423 = vpack.c.b16 %v391, %v391
    %v424 = vpack.c.b16 %v392, %v392
    %v425 = vpack.c.b16 %v393, %v393
    %v426 = vpack.c.b16 %v394, %v394
    %v427 = vpack.c.b16 %v395, %v395
    %v428 = vpack.c.b16 %v396, %v396
    %v429 = vpack.c.b16 %v397, %v397
    %v430 = vpack.c.b16 %v398, %v398
    %v431 = vpack.c.b16 %v399, %v399
    %v432 = vpack.c.b16 %v400, %v400
    %v433 = vpack.c.b16 %v401, %v401
    %v434 = vpack.c.b16 %v402, %v402
    %v435 = vpack.c.b16 %v403, %v403
    %468 = vst [vmem:[#allocation2] sm:$0xf] %v404
    %469 = vst [vmem:[#allocation2 + $0x4] sm:$0xf] %v405
    %470 = vst [vmem:[#allocation2 + $0x8] sm:$0xf] %v406
    %471 = vst [vmem:[#allocation2 + $0xc] sm:$0xf] %v407
    %472 = vst [vmem:[#allocation2 + $0x10] sm:$0xf] %v408
    %473 = vst [vmem:[#allocation2 + $0x14] sm:$0xf] %v409
    %474 = vst [vmem:[#allocation2 + $0x18] sm:$0xf] %v410
    %475 = vst [vmem:[#allocation2 + $0x1c] sm:$0xf] %v411
    %476 = vst [vmem:[#allocation2 + $0x20] sm:$0xf] %v412
    %477 = vst [vmem:[#allocation2 + $0x24] sm:$0xf] %v413
    %478 = vst [vmem:[#allocation2 + $0x28] sm:$0xf] %v414
    %479 = vst [vmem:[#allocation2 + $0x2c] sm:$0xf] %v415
    %480 = vst [vmem:[#allocation2 + $0x30] sm:$0xf] %v416
    %481 = vst [vmem:[#allocation2 + $0x34] sm:$0xf] %v417
    %482 = vst [vmem:[#allocation2 + $0x38] sm:$0xf] %v418
    %483 = vst [vmem:[#allocation2 + $0x3c] sm:$0xf] %v419
    %484 = vst [vmem:[#allocation2 + $0x40] sm:$0xf] %v420
    %485 = vst [vmem:[#allocation2 + $0x44] sm:$0xf] %v421
    %486 = vst [vmem:[#allocation2 + $0x48] sm:$0xf] %v422
    %487 = vst [vmem:[#allocation2 + $0x4c] sm:$0xf] %v423
    %488 = vst [vmem:[#allocation2 + $0x50] sm:$0xf] %v424
    %489 = vst [vmem:[#allocation2 + $0x54] sm:$0xf] %v425
    %490 = vst [vmem:[#allocation2 + $0x58] sm:$0xf] %v426
    %491 = vst [vmem:[#allocation2 + $0x5c] sm:$0xf] %v427
    %492 = vst [vmem:[#allocation2 + $0x60] sm:$0xf] %v428
    %493 = vst [vmem:[#allocation2 + $0x64] sm:$0xf] %v429
    %494 = vst [vmem:[#allocation2 + $0x68] sm:$0xf] %v430
    %495 = vst [vmem:[#allocation2 + $0x6c] sm:$0xf] %v431
    %496 = vst [vmem:[#allocation2 + $0x70] sm:$0xf] %v432
    %497 = vst [vmem:[#allocation2 + $0x74] sm:$0xf] %v433
    %498 = vst [vmem:[#allocation2 + $0x78] sm:$0xf] %v434
    %499 = vst [vmem:[#allocation2 + $0x7c] sm:$0xf] %v435
    // Predicated region
    $region10: #{tpu_custom_call.1} parent=1 // pred_check
      _
    $region11: #{tpu_custom_call.1} parent=1 // pred_check_branch
      %501 = sbr.rel (0) target = $region13
    $region12: #{tpu_custom_call.1} parent=1 // pred_region
      %s503 = ssub.s32 2048, 2048
      %504 = vsyncadd [#allocation3], %s503
      %s505 = sshll.u32 [#allocation2], 4
      %s506 = int_to_ptr.vmem [resolvable:$true] %s505
      %511 = dma.vmem_to_hbm [thread:$0]  %s506, 2048, %s2, [#allocation3], 64, 64, 4
    $region13: #{tpu_custom_call.1} parent=1 // pred_fallthru
      _
    // Predicated region
    $region14: #{tpu_custom_call.1} parent=1 // pred_check
      _
    $region15: #{tpu_custom_call.1} parent=1 // pred_check_branch
      %513 = sbr.rel (0) target = $region17
    $region16: #{tpu_custom_call.1} parent=1 // pred_region
      %514 = dma.done [#allocation3], 2048
    $region17: #{tpu_custom_call.1} parent=1 // pred_fallthru
      _
    %515 = vsyncpa [#allocation3], 1

</llo_original>
